<compile_context>
chip_gen: v6e
topology: v6e:2x2x1
jax: 0.10.0
libtpu: 0.0.40
codegen_flags: <defaults>
</compile_context>

<pallas_src>
import functools

import jax
import jax.numpy as jnp
import numpy as np
from jax.experimental import pallas as pl
from jax.experimental.pallas import tpu as pltpu

EPS = 1e-12
_VMEM_LIMIT_BYTES = 32 * 1024 * 1024   # explicit scoped-VMEM limit (safe on v5e/v6e/v7x)
_VMEM_TILE_BUDGET = 24 * 1024 * 1024   # headroom target used when deriving tile_t


# ---------------------------------------------------------------------------
# Tile-size selection: largest multiple-of-128 divisor of T whose VMEM footprint
# (double-buffered pipelined blocks + in-kernel temporaries) fits the budget.
# ---------------------------------------------------------------------------
def _pick_tile_t(T, S, D, H, out_itemsize, vmem_budget_bytes=_VMEM_TILE_BUDGET):
    per_t = 2 * (1 + S) * 4                     # mixture (f32) + sorted_idx (i32), double-buffered
    per_t += 2 * S * D * out_itemsize           # sorted_spk output block, double-buffered
    per_t += (H + 3 * S * D + S * H + S) * 4    # in-kernel temporaries (h1, spk, scatter, h2, est)
    cap = max(128, (vmem_budget_bytes // per_t) // 128 * 128)
    best = None
    t = 128
    while t <= min(T, cap):
        if T % t == 0:
            best = t
        t += 128
    if best is not None:
        return best
    if T * per_t <= vmem_budget_bytes:
        return T   # no multiple-of-128 divisor, but a full-T block still fits the budget
    raise ValueError(
        f"T={T} has no multiple-of-128 divisor and a full-T block exceeds the "
        f"{vmem_budget_bytes >> 20} MiB VMEM budget; pad T or pass tile_t explicitly.")


# ---------------------------------------------------------------------------
# Pass 1: speaker stack + per-timestep eye-mask scatter + centroid partial sums.
# ---------------------------------------------------------------------------
def _speaker_kernel(S, D, x_ref, sidx_ref, W1_ref, b1_ref, W2_ref, b2_ref,
                    sorted_ref, cent_ref, cent_acc):
    ti = pl.program_id(2)

    @pl.when(ti == 0)
    def _():
        cent_acc[...] = jnp.zeros_like(cent_acc)

    x = x_ref[0]                                                            # (1, TT)
    sidx = sidx_ref[0]                                                      # (S, TT) int32

    # speaker stack: Conv1d(1->H, k=1) + ReLU, Conv1d(H->S*D, k=1)
    h1 = jnp.maximum(W1_ref[...] * x + b1_ref[...], 0.0)                    # (H, TT)
    spk = jnp.dot(W2_ref[...], h1,
                  preferred_element_type=jnp.float32) + b2_ref[...]         # (S*D, TT)

    # eye-mask scatter from extract_latent:
    #   sorted[j, d, t] = sum_i [sorted_idx[t, i] == j] * spk[i, d, t]
    # TODO(synk): switch these loops to lax.fori_loop(unroll=True) if S grows beyond ~4.
    rows = []
    for j in range(S):
        acc = jnp.where(sidx[0:1, :] == j, spk[0:D, :], 0.0)
        for i in range(1, S):
            acc = acc + jnp.where(sidx[i:i + 1, :] == j,
                                  spk[i * D:(i + 1) * D, :], 0.0)
        rows.append(acc)
    block = jnp.concatenate(rows, axis=0)                                   # (S*D, TT) f32

    # single dense store (optionally bf16) + f32 centroid partial sum into scratch
    sorted_ref[0] = block.astype(sorted_ref.dtype)
    cent_acc[...] += jnp.sum(block, axis=-1, keepdims=True)                 # (S*D, 1)

    @pl.when(ti == pl.num_programs(2) - 1)
    def _():
        cent_ref[0, 0] = cent_acc[...]


# ---------------------------------------------------------------------------
# Pass 2: separation encoder + precomputed FiLM + block-diagonal decoder matmul.
# ---------------------------------------------------------------------------
def _separation_kernel(S, x_ref, film_ref, We_ref, be_ref, Wdec_ref, bo_ref, est_ref):
    x = x_ref[0]                                                            # (1, TT)
    enc = jnp.maximum(We_ref[...] * x + be_ref[...], 0.0)                   # (H, TT)
    enc_rep = jnp.concatenate([enc] * S, axis=0)                            # (S*H, TT)

    # FiLM scale/shift precomputed per batch in the wrapper: film[0]=scale, film[1]=shift
    h2 = jnp.maximum(enc_rep * film_ref[0, 0] + film_ref[0, 1], 0.0)        # (S*H, TT)

    # batched decoder: one block-diagonal (S, S*H) @ (S*H, TT) MXU matmul
    est = jnp.dot(Wdec_ref[...], h2,
                  preferred_element_type=jnp.float32) + bo_ref[0]           # (S, TT)
    est_ref[0] = est.astype(est_ref.dtype)


# ---------------------------------------------------------------------------
# Wrapper (equivalent of WaveSplit.forward(mixture, spk_idx, sorted_idx,
# return_spk_vector=True) in training mode, plus normalized embeddings).
# ---------------------------------------------------------------------------
def wavesplit_forward(mixture, spk_idx, sorted_idx, params, tile_t=None,
                      n_parallel_t=None, spk_vector_dtype=jnp.float32):
    B, _, T = mixture.shape
    S, D, H = params["n_sources"], params["latent_dim"], params["hidden"]

    out_itemsize = jnp.dtype(spk_vector_dtype).itemsize
    if tile_t is None:
        tile_t = _pick_tile_t(T, S, D, H, out_itemsize)
    assert T % tile_t == 0, "T must be divisible by tile_t"
    nT = T // tile_t

    if n_parallel_t is None:
        n_parallel_t = 2 if (nT >= 2 and nT % 2 == 0) else 1
    assert nT % n_parallel_t == 0, "n_parallel_t must divide T // tile_t"
    PT = n_parallel_t
    nTi = nT // PT

    sidx = jnp.transpose(sorted_idx, (0, 2, 1)).astype(jnp.int32)           # (B, S, T)

    cparams1 = pltpu.CompilerParams(
        dimension_semantics=("parallel", "parallel", "arbitrary"),
        vmem_limit_bytes=_VMEM_LIMIT_BYTES)
    cparams2 = pltpu.CompilerParams(
        dimension_semantics=("parallel", "parallel"),
        vmem_limit_bytes=_VMEM_LIMIT_BYTES)

    # ---- pass 1: speaker stack + scatter + centroid partial sums ----
    spk_kernel = functools.partial(_speaker_kernel, S, D)
    sorted_flat, cent_partial = pl.pallas_call(
        spk_kernel,
        grid=(B, PT, nTi),
        in_specs=[
            pl.BlockSpec((1, 1, tile_t), lambda b, p, t: (b, 0, p * nTi + t)),   # mixture
            pl.BlockSpec((1, S, tile_t), lambda b, p, t: (b, 0, p * nTi + t)),   # sorted_idx (B,S,T)
            pl.BlockSpec((H, 1), lambda b, p, t: (0, 0)),                        # speaker conv1 W
            pl.BlockSpec((H, 1), lambda b, p, t: (0, 0)),                        # speaker conv1 b
            pl.BlockSpec((S * D, H), lambda b, p, t: (0, 0)),                    # speaker conv2 W
            pl.BlockSpec((S * D, 1), lambda b, p, t: (0, 0)),                    # speaker conv2 b
        ],
        out_specs=[
            pl.BlockSpec((1, S * D, tile_t), lambda b, p, t: (b, 0, p * nTi + t)),  # sorted_spk
            pl.BlockSpec((1, 1, S * D, 1), lambda b, p, t: (b, p, 0, 0)),           # centroid partials
        ],
        out_shape=[
            jax.ShapeDtypeStruct((B, S * D, T), spk_vector_dtype),
            jax.ShapeDtypeStruct((B, PT, S * D, 1), jnp.float32),
        ],
        scratch_shapes=[pltpu.VMEM((S * D, 1), jnp.float32)],
        compiler_params=cparams1,
    )(mixture, sidx, params["W1"], params["b1"], params["W2"], params["b2"])

    sorted_spk = sorted_flat.reshape(B, S, D, T)
    centroids = (cent_partial.sum(axis=1)[..., 0] / T).reshape(B, S, D)     # (B, S, D)

    # ---- FiLM hoisted out of the per-tile loop: depends only on b (tiny XLA einsum) ----
    scale = jnp.einsum("hd,bsd->bsh", params["Wg"], centroids) + params["bg"][:, 0][None, None]
    shift = jnp.einsum("hd,bsd->bsh", params["Wh"], centroids) + params["bh"][:, 0][None, None]
    film = jnp.stack([scale.reshape(B, S * H, 1),
                      shift.reshape(B, S * H, 1)], axis=1)                  # (B, 2, S*H, 1)

    Wdec = jnp.kron(jnp.eye(S, dtype=jnp.float32), params["wo"].T)          # (S, S*H) block-diagonal
    bo = params["bo"].reshape((1,)).astype(jnp.float32)                     # SMEM scalar

    # ---- pass 2: centroid-conditioned separation ----
    sep_kernel = functools.partial(_separation_kernel, S)
    est = pl.pallas_call(
        sep_kernel,
        grid=(B, nT),
        in_specs=[
            pl.BlockSpec((1, 1, tile_t), lambda b, t: (b, 0, t)),            # mixture
            pl.BlockSpec((1, 2, S * H, 1), lambda b, t: (b, 0, 0, 0)),        # FiLM (per batch)
            pl.BlockSpec((H, 1), lambda b, t: (0, 0)),                        # separation encoder W
            pl.BlockSpec((H, 1), lambda b, t: (0, 0)),                        # separation encoder b
            pl.BlockSpec((S, S * H), lambda b, t: (0, 0)),                    # block-diag decoder
            pl.BlockSpec(memory_space=pltpu.MemorySpace.SMEM),                # decoder bias scalar
        ],
        out_specs=pl.BlockSpec((1, S, tile_t), lambda b, t: (b, 0, t)),
        out_shape=jax.ShapeDtypeStruct((B, S, T), jnp.float32),
        compiler_params=cparams2,
    )(mixture, film, params["We"], params["be"], Wdec, bo)

    # Embedding L2-normalize as tiny XLA glue (torch.nn.functional.normalize semantics).
    emb = params["embedding"]
    emb_norm = emb / jnp.maximum(jnp.linalg.norm(emb, axis=-1, keepdims=True), EPS)
    spk_embedding = emb_norm[spk_idx]                                        # (B, S, D)
    return est, sorted_spk, spk_embedding, emb_norm


# ---------------------------------------------------------------------------
# Pure-JAX reference (mirrors the PyTorch module semantics) for verification.
# ---------------------------------------------------------------------------
def reference(mixture, spk_idx, sorted_idx, params):
    S, D = params["n_sources"], params["latent_dim"]
    B, _, T = mixture.shape
    W1, b1, W2, b2 = params["W1"], params["b1"], params["W2"], params["b2"]
    We, be, Wg, bg = params["We"], params["be"], params["Wg"], params["bg"]
    Wh, bh, wo, bo = params["Wh"], params["bh"], params["wo"], params["bo"]

    h1 = jax.nn.relu(jnp.einsum("hc,bct->bht", W1, mixture) + b1[None])
    spk = jnp.einsum("oh,bht->bot", W2, h1) + b2[None]                       # (B, S*D, T)
    spk4 = spk.reshape(B, S, D, T)
    spk_perm = jnp.transpose(spk4, (0, 3, 1, 2))                             # (B, T, S, D)
    mask = jnp.eye(S, dtype=jnp.float32)[sorted_idx]                         # (B, T, S, S)
    sorted_v = jnp.sum(mask[..., None] * spk_perm[:, :, :, None, :], axis=2) # (B, T, S, D)
    sorted_final = jnp.transpose(sorted_v, (0, 2, 3, 1))                     # (B, S, D, T)
    centroids = sorted_final.mean(axis=-1)                                   # (B, S, D)

    enc = jax.nn.relu(jnp.einsum("hc,bct->bht", We, mixture) + be[None])     # (B, H, T)
    scale = jnp.einsum("hd,bsd->bsh", Wg, centroids) + bg[:, 0][None, None]
    shift = jnp.einsum("hd,bsd->bsh", Wh, centroids) + bh[:, 0][None, None]
    h = jax.nn.relu(enc[:, None] * scale[..., None] + shift[..., None])      # (B, S, H, T)
    est = jnp.einsum("h,bsht->bst", wo[:, 0], h) + bo[0, 0]

    emb = params["embedding"]
    emb_norm = emb / jnp.maximum(jnp.linalg.norm(emb, axis=-1, keepdims=True), EPS)
    return est, sorted_final, emb_norm[spk_idx], emb_norm


if __name__ == "__main__":
    B, S, D, H, T, N = 2, 2, 8, 16, 2048, 10

    key = jax.random.PRNGKey(0)
    ks = jax.random.split(key, 16)

    def rnd(k, shape, scale=0.1):
        return (scale * jax.random.normal(k, shape)).astype(jnp.float32)

    params = dict(
        n_sources=S, latent_dim=D, hidden=H,
        W1=rnd(ks[0], (H, 1)), b1=rnd(ks[1], (H, 1)),
        W2=rnd(ks[2], (S * D, H)), b2=rnd(ks[3], (S * D, 1)),
        We=rnd(ks[4], (H, 1)), be=rnd(ks[5], (H, 1)),
        Wg=rnd(ks[6], (H, D)), bg=rnd(ks[7], (H, 1)),
        Wh=rnd(ks[8], (H, D)), bh=rnd(ks[9], (H, 1)),
        wo=rnd(ks[10], (H, 1)), bo=rnd(ks[11], (1, 1)),
        embedding=rnd(ks[12], (N, D), scale=1.0),
    )

    mixture = jax.random.normal(ks[13], (B, 1, T), dtype=jnp.float32)        # (B, 1, T)
    spk_idx = jax.random.randint(ks[14], (B, S), 0, N)                       # (B, S)
    sorted_idx = jax.random.randint(ks[15], (B, T, S), 0, S)                 # (B, T, S)

    refs = reference(mixture, spk_idx, sorted_idx, params)

    # f32 outputs, explicit small tile + 2-way parallel T split to exercise the
    # resident-centroid accumulation and the v7x megacore path.
    outs = jax.block_until_ready(
        wavesplit_forward(mixture, spk_idx, sorted_idx, params,
                          tile_t=256, n_parallel_t=2))
    for o, r in zip(outs, refs):
        np.testing.assert_allclose(np.asarray(o), np.asarray(r), rtol=1e-4, atol=1e-4)

    # bf16 sorted_spk output (halves the dominant HBM write traffic); auto tile /
    # auto parallel split; est stays f32 (centroids accumulate in f32 in-kernel).
    outs_bf = jax.block_until_ready(
        wavesplit_forward(mixture, spk_idx, sorted_idx, params,
                          spk_vector_dtype=jnp.bfloat16))
    np.testing.assert_allclose(np.asarray(outs_bf[0]), np.asarray(refs[0]),
                               rtol=1e-4, atol=1e-4)
    np.testing.assert_allclose(np.asarray(outs_bf[1]).astype(np.float32),
                               np.asarray(refs[1]), rtol=2e-2, atol=2e-2)

    print("KERNEL_OK")
</pallas_src>

<mosaic_0001>
module attributes {stable_mosaic.version = 11 : i64} {
  func.func @_speaker_kernel(%arg0: i32, %arg1: i32, %arg2: i32, %arg3: memref<1x1x256xf32, #tpu.memory_space<vmem>>, %arg4: memref<1x2x256xi32, #tpu.memory_space<vmem>>, %arg5: memref<16x1xf32, #tpu.memory_space<vmem>>, %arg6: memref<16x1xf32, #tpu.memory_space<vmem>>, %arg7: memref<16x16xf32, #tpu.memory_space<vmem>>, %arg8: memref<16x1xf32, #tpu.memory_space<vmem>>, %arg9: memref<1x16x256xf32, #tpu.memory_space<vmem>>, %arg10: memref<1x1x16x1xf32, #tpu.memory_space<vmem>>, %arg11: memref<16x1xf32, #tpu.memory_space<vmem>>) attributes {dimension_semantics = [#tpu.dimension_semantics<parallel>, #tpu.dimension_semantics<parallel>, #tpu.dimension_semantics<arbitrary>], iteration_bounds = array<i64: 2, 2, 4>, scalar_prefetch = 0 : i64, scratch_operands = 1 : i64, tpu.core_type = #tpu.core_type<tc>, window_params = [{transform_indices = @transform_0, window_bounds = array<i64: 1, 1, 256>}, {transform_indices = @transform_1, window_bounds = array<i64: 1, 2, 256>}, {pipeline_mode = #tpu.pipeline_mode<synchronous>, transform_indices = @transform_2, window_bounds = array<i64: 16, 1>}, {pipeline_mode = #tpu.pipeline_mode<synchronous>, transform_indices = @transform_3, window_bounds = array<i64: 16, 1>}, {pipeline_mode = #tpu.pipeline_mode<synchronous>, transform_indices = @transform_4, window_bounds = array<i64: 16, 16>}, {pipeline_mode = #tpu.pipeline_mode<synchronous>, transform_indices = @transform_5, window_bounds = array<i64: 16, 1>}, {transform_indices = @transform_6, window_bounds = array<i64: 1, 16, 256>}, {transform_indices = @transform_7, window_bounds = array<i64: 1, 1, 16, 1>}]} {
    %c0_i32 = arith.constant 0 : i32
    %0 = arith.cmpi eq, %arg2, %c0_i32 : i32
    %1 = arith.extui %0 : i1 to i32
    %c0_i32_0 = arith.constant 0 : i32
    %2 = arith.cmpi ne, %1, %c0_i32_0 : i32
    scf.if %2 {
      %cst_31 = arith.constant 0.000000e+00 : f32
      %67 = vector.broadcast %cst_31 : f32 to vector<16x1xf32>
      %c0_32 = arith.constant 0 : index
      %c0_33 = arith.constant 0 : index
      %68 = vector.load %arg11[%c0_32, %c0_33] : memref<16x1xf32, #tpu.memory_space<vmem>>, vector<16x1xf32>
      tpu.vector_store %arg11[%c0_32, %c0_33], %67 {strides = array<i32>} : memref<16x1xf32, #tpu.memory_space<vmem>>, vector<16x1xf32>,
    } else {
    }
    %c0 = arith.constant 0 : index
    %c0_1 = arith.constant 0 : index
    %c0_2 = arith.constant 0 : index
    %3 = vector.load %arg3[%c0, %c0_1, %c0_2] : memref<1x1x256xf32, #tpu.memory_space<vmem>>, vector<1x1x256xf32>
    %4 = vector.shape_cast %3 : vector<1x1x256xf32> to vector<1x256xf32>
    %c0_3 = arith.constant 0 : index
    %c0_4 = arith.constant 0 : index
    %c0_5 = arith.constant 0 : index
    %5 = vector.load %arg4[%c0_3, %c0_4, %c0_5] : memref<1x2x256xi32, #tpu.memory_space<vmem>>, vector<1x2x256xi32>
    %6 = vector.shape_cast %5 : vector<1x2x256xi32> to vector<2x256xi32>
    %c0_6 = arith.constant 0 : index
    %c0_7 = arith.constant 0 : index
    %7 = vector.load %arg5[%c0_6, %c0_7] : memref<16x1xf32, #tpu.memory_space<vmem>>, vector<16x1xf32>
    %8 = vector.broadcast %7 : vector<16x1xf32> to vector<16x256xf32>
    %9 = vector.broadcast %4 : vector<1x256xf32> to vector<16x256xf32>
    %10 = arith.mulf %8, %9 : vector<16x256xf32>
    %c0_8 = arith.constant 0 : index
    %c0_9 = arith.constant 0 : index
    %11 = vector.load %arg6[%c0_8, %c0_9] : memref<16x1xf32, #tpu.memory_space<vmem>>, vector<16x1xf32>
    %12 = vector.broadcast %11 : vector<16x1xf32> to vector<16x256xf32>
    %13 = arith.addf %10, %12 : vector<16x256xf32>
    %cst = arith.constant 0.000000e+00 : f32
    %14 = vector.broadcast %cst : f32 to vector<16x256xf32>
    %15 = arith.maximumf %13, %14 : vector<16x256xf32>
    %c0_10 = arith.constant 0 : index
    %c0_11 = arith.constant 0 : index
    %16 = vector.load %arg7[%c0_10, %c0_11] : memref<16x16xf32, #tpu.memory_space<vmem>>, vector<16x16xf32>
    %cst_12 = arith.constant dense<0.000000e+00> : vector<16x256xf32>
    %17 = tpu.matmul %16, %15, %cst_12 {dimension_numbers = #tpu.dot_dimension_numbers<[1], [0], [0], [1], [0, 0, 1, 1], [], []>} : vector<16x16xf32>, vector<16x256xf32>, vector<16x256xf32> -> vector<16x256xf32>
    %c0_13 = arith.constant 0 : index
    %c0_14 = arith.constant 0 : index
    %18 = vector.load %arg8[%c0_13, %c0_14] : memref<16x1xf32, #tpu.memory_space<vmem>>, vector<16x1xf32>
    %19 = vector.broadcast %18 : vector<16x1xf32> to vector<16x256xf32>
    %20 = arith.addf %17, %19 : vector<16x256xf32>
    %21 = vector.extract_strided_slice %6 {offsets = [0, 0], sizes = [1, 256], strides = [1, 1]} : vector<2x256xi32> to vector<1x256xi32>
    %c0_i32_15 = arith.constant 0 : i32
    %22 = vector.broadcast %c0_i32_15 : i32 to vector<1x256xi32>
    %23 = arith.cmpi eq, %21, %22 : vector<1x256xi32>
    %24 = vector.extract_strided_slice %20 {offsets = [0, 0], sizes = [8, 256], strides = [1, 1]} : vector<16x256xf32> to vector<8x256xf32>
    %cst_16 = arith.constant 0.000000e+00 : f32
    %25 = vector.shape_cast %23 : vector<1x256xi1> to vector<1x256xi1>
    %26 = vector.broadcast %25 : vector<1x256xi1> to vector<8x256xi1>
    %27 = vector.broadcast %cst_16 : f32 to vector<8x256xf32>
    %28 = arith.select %26, %24, %27 : vector<8x256xi1>, vector<8x256xf32>
    %29 = vector.extract_strided_slice %6 {offsets = [1, 0], sizes = [1, 256], strides = [1, 1]} : vector<2x256xi32> to vector<1x256xi32>
    %c0_i32_17 = arith.constant 0 : i32
    %30 = vector.broadcast %c0_i32_17 : i32 to vector<1x256xi32>
    %31 = arith.cmpi eq, %29, %30 : vector<1x256xi32>
    %32 = vector.extract_strided_slice %20 {offsets = [8, 0], sizes = [8, 256], strides = [1, 1]} : vector<16x256xf32> to vector<8x256xf32>
    %cst_18 = arith.constant 0.000000e+00 : f32
    %33 = vector.shape_cast %31 : vector<1x256xi1> to vector<1x256xi1>
    %34 = vector.broadcast %33 : vector<1x256xi1> to vector<8x256xi1>
    %35 = vector.broadcast %cst_18 : f32 to vector<8x256xf32>
    %36 = arith.select %34, %32, %35 : vector<8x256xi1>, vector<8x256xf32>
    %37 = arith.addf %28, %36 : vector<8x256xf32>
    %38 = vector.extract_strided_slice %6 {offsets = [0, 0], sizes = [1, 256], strides = [1, 1]} : vector<2x256xi32> to vector<1x256xi32>
    %c1_i32 = arith.constant 1 : i32
    %39 = vector.broadcast %c1_i32 : i32 to vector<1x256xi32>
    %40 = arith.cmpi eq, %38, %39 : vector<1x256xi32>
    %41 = vector.extract_strided_slice %20 {offsets = [0, 0], sizes = [8, 256], strides = [1, 1]} : vector<16x256xf32> to vector<8x256xf32>
    %cst_19 = arith.constant 0.000000e+00 : f32
    %42 = vector.shape_cast %40 : vector<1x256xi1> to vector<1x256xi1>
    %43 = vector.broadcast %42 : vector<1x256xi1> to vector<8x256xi1>
    %44 = vector.broadcast %cst_19 : f32 to vector<8x256xf32>
    %45 = arith.select %43, %41, %44 : vector<8x256xi1>, vector<8x256xf32>
    %46 = vector.extract_strided_slice %6 {offsets = [1, 0], sizes = [1, 256], strides = [1, 1]} : vector<2x256xi32> to vector<1x256xi32>
    %c1_i32_20 = arith.constant 1 : i32
    %47 = vector.broadcast %c1_i32_20 : i32 to vector<1x256xi32>
    %48 = arith.cmpi eq, %46, %47 : vector<1x256xi32>
    %49 = vector.extract_strided_slice %20 {offsets = [8, 0], sizes = [8, 256], strides = [1, 1]} : vector<16x256xf32> to vector<8x256xf32>
    %cst_21 = arith.constant 0.000000e+00 : f32
    %50 = vector.shape_cast %48 : vector<1x256xi1> to vector<1x256xi1>
    %51 = vector.broadcast %50 : vector<1x256xi1> to vector<8x256xi1>
    %52 = vector.broadcast %cst_21 : f32 to vector<8x256xf32>
    %53 = arith.select %51, %49, %52 : vector<8x256xi1>, vector<8x256xf32>
    %54 = arith.addf %45, %53 : vector<8x256xf32>
    %55 = tpu.concatenate %37, %54 in 0 : vector<8x256xf32>, vector<8x256xf32> -> vector<16x256xf32>
    %c0_22 = arith.constant 0 : index
    %c0_23 = arith.constant 0 : index
    %c0_24 = arith.constant 0 : index
    %56 = vector.load %arg9[%c0_22, %c0_23, %c0_24] : memref<1x16x256xf32, #tpu.memory_space<vmem>>, vector<1x16x256xf32>
    %57 = vector.shape_cast %56 : vector<1x16x256xf32> to vector<16x256xf32>
    %58 = vector.shape_cast %55 : vector<16x256xf32> to vector<1x16x256xf32>
    tpu.vector_store %arg9[%c0_22, %c0_23, %c0_24], %58 {strides = array<i32>} : memref<1x16x256xf32, #tpu.memory_space<vmem>>, vector<1x16x256xf32>,
    %c0_25 = arith.constant 0 : index
    %c0_26 = arith.constant 0 : index
    %59 = vector.load %arg11[%c0_25, %c0_26] : memref<16x1xf32, #tpu.memory_space<vmem>>, vector<16x1xf32>
    %cst_27 = arith.constant dense<0.000000e+00> : vector<16xf32>
    %60 = vector.multi_reduction <add>, %55, %cst_27 [1] : vector<16x256xf32> to vector<16xf32>
    %61 = vector.shape_cast %60 : vector<16xf32> to vector<16x1xf32>
    %62 = arith.addf %59, %61 : vector<16x1xf32>
    %c0_28 = arith.constant 0 : index
    %c0_29 = arith.constant 0 : index
    %63 = vector.load %arg11[%c0_28, %c0_29] : memref<16x1xf32, #tpu.memory_space<vmem>>, vector<16x1xf32>
    tpu.vector_store %arg11[%c0_28, %c0_29], %62 {strides = array<i32>} : memref<16x1xf32, #tpu.memory_space<vmem>>, vector<16x1xf32>,
    %c3_i32 = arith.constant 3 : i32
    %64 = arith.cmpi eq, %arg2, %c3_i32 : i32
    %65 = arith.extui %64 : i1 to i32
    %c0_i32_30 = arith.constant 0 : i32
    %66 = arith.cmpi ne, %65, %c0_i32_30 : i32
    scf.if %66 {
      %c0_31 = arith.constant 0 : index
      %c0_32 = arith.constant 0 : index
      %67 = vector.load %arg11[%c0_31, %c0_32] : memref<16x1xf32, #tpu.memory_space<vmem>>, vector<16x1xf32>
      %c0_33 = arith.constant 0 : index
      %c0_34 = arith.constant 0 : index
      %c0_35 = arith.constant 0 : index
      %c0_36 = arith.constant 0 : index
      %68 = vector.load %arg10[%c0_33, %c0_34, %c0_35, %c0_36] : memref<1x1x16x1xf32, #tpu.memory_space<vmem>>, vector<1x1x16x1xf32>
      %69 = vector.shape_cast %68 : vector<1x1x16x1xf32> to vector<16x1xf32>
      %70 = vector.shape_cast %67 : vector<16x1xf32> to vector<1x1x16x1xf32>
      tpu.vector_store %arg10[%c0_33, %c0_34, %c0_35, %c0_36], %70 {strides = array<i32>} : memref<1x1x16x1xf32, #tpu.memory_space<vmem>>, vector<1x1x16x1xf32>,
    } else {
    }
    return
  }
  func.func @transform_0(%arg0: i32, %arg1: i32, %arg2: i32) -> (i32, i32, i32) {
    %c4_i32 = arith.constant 4 : i32
    %0 = arith.muli %arg1, %c4_i32 : i32
    %1 = arith.addi %0, %arg2 : i32
    %c0_i32 = arith.constant 0 : i32
    %c0_i32_0 = arith.constant 0 : i32
    return %arg0, %c0_i32, %1 : i32, i32, i32
  }
  func.func @transform_1(%arg0: i32, %arg1: i32, %arg2: i32) -> (i32, i32, i32) {
    %c4_i32 = arith.constant 4 : i32
    %0 = arith.muli %arg1, %c4_i32 : i32
    %1 = arith.addi %0, %arg2 : i32
    %c0_i32 = arith.constant 0 : i32
    %c0_i32_0 = arith.constant 0 : i32
    return %arg0, %c0_i32, %1 : i32, i32, i32
  }
  func.func @transform_2(%arg0: i32, %arg1: i32, %arg2: i32) -> (i32, i32) {
    %c0_i32 = arith.constant 0 : i32
    %c0_i32_0 = arith.constant 0 : i32
    %c0_i32_1 = arith.constant 0 : i32
    return %c0_i32, %c0_i32_0 : i32, i32
  }
  func.func @transform_3(%arg0: i32, %arg1: i32, %arg2: i32) -> (i32, i32) {
    %c0_i32 = arith.constant 0 : i32
    %c0_i32_0 = arith.constant 0 : i32
    %c0_i32_1 = arith.constant 0 : i32
    return %c0_i32, %c0_i32_0 : i32, i32
  }
  func.func @transform_4(%arg0: i32, %arg1: i32, %arg2: i32) -> (i32, i32) {
    %c0_i32 = arith.constant 0 : i32
    %c0_i32_0 = arith.constant 0 : i32
    %c0_i32_1 = arith.constant 0 : i32
    return %c0_i32, %c0_i32_0 : i32, i32
  }
  func.func @transform_5(%arg0: i32, %arg1: i32, %arg2: i32) -> (i32, i32) {
    %c0_i32 = arith.constant 0 : i32
    %c0_i32_0 = arith.constant 0 : i32
    %c0_i32_1 = arith.constant 0 : i32
    return %c0_i32, %c0_i32_0 : i32, i32
  }
  func.func @transform_6(%arg0: i32, %arg1: i32, %arg2: i32) -> (i32, i32, i32) {
    %c4_i32 = arith.constant 4 : i32
    %0 = arith.muli %arg1, %c4_i32 : i32
    %1 = arith.addi %0, %arg2 : i32
    %c0_i32 = arith.constant 0 : i32
    %c0_i32_0 = arith.constant 0 : i32
    return %arg0, %c0_i32, %1 : i32, i32, i32
  }
  func.func @transform_7(%arg0: i32, %arg1: i32, %arg2: i32) -> (i32, i32, i32, i32) {
    %c0_i32 = arith.constant 0 : i32
    %c0_i32_0 = arith.constant 0 : i32
    %c0_i32_1 = arith.constant 0 : i32
    return %arg0, %arg1, %c0_i32, %c0_i32_0 : i32, i32, i32, i32
  }
}

</mosaic_0001>

<llo_original>
// kernel: tpu_custom_call.1
$region0: #{tpu_custom_call.1}
  #allocation0 [shape = 'u32[]', space=smem, size = 0x4, offset = 0x4, fixed_abs, tag = 'smem constant byte address 0x4 - core index']
  #allocation1 [shape = 'u32[144,128]{1,0:T(1,128)}', space=vmem, size = 0x12000, scoped, tag = 'internal scratch']
  #allocation2 [shape = 'f32[16,1]{1,0:T(8,128)}', space=vmem, size = 0x2000, scoped, tag = 'scratch operand']
  %s0 = inlined_call_operand.vmem [shape: f32[2,1,2048], index: 0, kind: input, shape index: {}]
  %s1 = inlined_call_operand.hbm [shape: s32[2,2,2048], index: 1, kind: input, shape index: {}]
  %s2 = inlined_call_operand.vmem [shape: f32[16,1], index: 2, kind: input, shape index: {}]
  %s3 = inlined_call_operand.vmem [shape: f32[16,1], index: 3, kind: input, shape index: {}]
  %s4 = inlined_call_operand.vmem [shape: f32[16,16], index: 4, kind: input, shape index: {}]
  %s5 = inlined_call_operand.vmem [shape: f32[16,1], index: 5, kind: input, shape index: {}]
  %s6 = inlined_call_operand.hbm [shape: f32[2,16,2048], index: 6, kind: output, shape index: {0}]
  %s7 = inlined_call_operand.vmem [shape: f32[2,2,16,1], index: 7, kind: output, shape index: {1}]
  %8 = xla_tuple %s6, %s7
  %s9 = sld [smem:[#allocation0]]
  $region77: #{tpu_custom_call.1} parent=0
    _
  %s11 = ssub.s32 1, %s9
  %s12 = scalar_select 0, %s11, %s9
  $region1: #{tpu_custom_call.1} parent=0
    #allocation3 [shape = 'u8[4096]{0}', space=vmem, size = 0x1000, scoped, tag = 'input window, operand 1']
    #allocation4 [shape = 's32[2]{0}', space=sflag, size = 0x8, scoped, tag = 'scoped memory for tpu_custom_call.1']
    #allocation5 [shape = 's32[2]{0}', space=sflag, size = 0x8, scoped, tag = 'scoped memory for tpu_custom_call.1']
    #allocation6 [shape = 'u8[32768]{0}', space=vmem, size = 0x8000, scoped, tag = 'output window, operand 0']
    %13 = vsyncpa [#allocation4], 0
    %s14 = scalar_lea.sflag [#allocation4], 1
    %15 = vsyncpa %s14, 0
    %16 = vsyncpa [#allocation5], 0
    %s17 = scalar_lea.sflag [#allocation5], 1
    %18 = vsyncpa %s17, 0
    loop: start=0, step=1, limit=18
    $region2: #{tpu_custom_call.1} parent=1 // loop_pre_header
      _
    $region3: #{tpu_custom_call.1} parent=1 // loop_header
      %s20 = sphi 0, %s24
      %p21 = scmp.ge.s32.totalorder %s20, 18
      %s27 = sphi 0, %s46
      %s28 = sphi 0, %s42
      %s29 = sphi 0, %s38
      %s30 = sphi 0, %s27
      %s31 = sphi 0, %s28
      %s32 = sphi 0, %s29
      %s33 = sphi 0, %s30
      %s34 = sphi 0, %s31
      %s35 = sphi 0, %s32
      %s55 = sphi 0, %s57
      %s58 = sphi 0, %s55
      %s59 = sphi 0, %s58
      %s75 = sphi 0, %s59
      %s87 = sphi 0, %s89
      %s90 = sphi 0, %s87
      %s91 = sphi 0, %s90
      %s107 = sphi 0, %s91
      %s111 = sphi 0, %s111
      %s113 = sphi 0, %s111
      %s114 = sphi 0, %s113
      %s128 = sphi 0, %s114
      %s132 = sphi 0, %s132
      %s134 = sphi 0, %s132
      %s135 = sphi 0, %s134
      %s149 = sphi 0, %s135
      %s153 = sphi 0, %s153
      %s155 = sphi 0, %s153
      %s156 = sphi 0, %s155
      %s170 = sphi 0, %s156
      %s174 = sphi 0, %s174
      %s176 = sphi 0, %s174
      %s177 = sphi 0, %s176
      %s191 = sphi 0, %s177
      %s203 = sphi 0, %s205
      %s206 = sphi 0, %s203
      %s207 = sphi 0, %s206
      %s223 = sphi 0, %s207
      %s231 = sphi 0, %s233
      %s234 = sphi 0, %s231
      %s235 = sphi 0, %s234
      %s251 = sphi 0, %s235
    $region4: #{tpu_custom_call.1} parent=1 // loop_header_branch
      %23 = sbr.rel (%p21) target = $region8
    $region5: #{tpu_custom_call.1} parent=1 // loop_body
      %s25 = ssub.s32 %s20, 1
      %s26 = ssub.s32 %s20, 2
      %s36 = sadd.s32 1, %s29
      %p37 = scmp.ge.s32.totalorder %s36, 4
      %s38 = scalar_select %p37, 0, %s36
      %s39 = sadd.s32 1, %s28
      %s40 = scalar_select %p37, %s39, %s28
      %p41 = scmp.ge.s32.totalorder %s40, 2
      %s42 = scalar_select %p41, 0, %s40
      %s43 = sadd.s32 1, %s27
      %s44 = scalar_select %p41, %s43, %s27
      %p45 = scmp.ge.s32.totalorder %s44, 2
      %s46 = scalar_select %p45, 0, %s44
      %s47 = smul.u32 %s28, 4
      %s48 = sadd.s32 %s47, %s29
      %s49 = smul.u32 %s42, 4
      %s50 = sadd.s32 %s49, %s38
      %s51 = ssub.s32 %s27, %s46
      %s52 = ssub.s32 %s48, %s50
      %s53 = sor.u32 %s51, %s52
      %p54 = scmp.eq.s32.totalorder %s53, 0
      %s56 = sadd.s32 %s55, 1
      %s57 = scalar_select %p54, %s55, %s56
      %p60 = pneg %p54
      %p61 = scmp.eq.s32.totalorder %s20, 15
      %p62 = por %p60, %p61
      %p63 = scmp.ne.s32.totalorder %s55, %s58
      %p64 = scmp.eq.s32.totalorder %s20, 0
      %p65 = por %p63, %p64
      %p66 = scmp.ne.s32.totalorder %s55, %s58
      %p67 = scmp.eq.s32.totalorder %s25, 15
      %p68 = por %p66, %p67
      %p69 = scmp.ne.s32.totalorder %s58, %s59
      %p70 = scmp.eq.s32.totalorder %s25, 0
      %p71 = por %p69, %p70
      %p72 = scmp.ne.s32.totalorder %s58, %s59
      %p73 = scmp.eq.s32.totalorder %s26, 15
      %p74 = por %p72, %p73
      %p76 = scmp.ne.s32.totalorder %s59, %s75
      %p77 = scmp.eq.s32.totalorder %s26, 0
      %p78 = por %p76, %p77
      %s79 = smul.u32 %s28, 4
      %s80 = sadd.s32 %s79, %s29
      %s81 = smul.u32 %s42, 4
      %s82 = sadd.s32 %s81, %s38
      %s83 = ssub.s32 %s27, %s46
      %s84 = ssub.s32 %s80, %s82
      %s85 = sor.u32 %s83, %s84
      %p86 = scmp.eq.s32.totalorder %s85, 0
      %s88 = sadd.s32 %s87, 1
      %s89 = scalar_select %p86, %s87, %s88
      %p92 = pneg %p86
      %p93 = scmp.eq.s32.totalorder %s20, 15
      %p94 = por %p92, %p93
      %p95 = scmp.ne.s32.totalorder %s87, %s90
      %p96 = scmp.eq.s32.totalorder %s20, 0
      %p97 = por %p95, %p96
      %p98 = scmp.ne.s32.totalorder %s87, %s90
      %p99 = scmp.eq.s32.totalorder %s25, 15
      %p100 = por %p98, %p99
      %p101 = scmp.ne.s32.totalorder %s90, %s91
      %p102 = scmp.eq.s32.totalorder %s25, 0
      %p103 = por %p101, %p102
      %p104 = scmp.ne.s32.totalorder %s90, %s91
      %p105 = scmp.eq.s32.totalorder %s26, 15
      %p106 = por %p104, %p105
      %p108 = scmp.ne.s32.totalorder %s91, %s107
      %p109 = scmp.eq.s32.totalorder %s26, 0
      %p110 = por %p108, %p109
      %s112 = sadd.s32 %s111, 1
      %p115 = scmp.eq.s32.totalorder %s20, 15
      %p116 = scmp.ne.s32.totalorder %s111, %s113
      %p117 = scmp.eq.s32.totalorder %s20, 0
      %p118 = por %p116, %p117
      %p119 = scmp.ne.s32.totalorder %s111, %s113
      %p120 = scmp.eq.s32.totalorder %s25, 15
      %p121 = por %p119, %p120
      %p122 = scmp.ne.s32.totalorder %s113, %s114
      %p123 = scmp.eq.s32.totalorder %s25, 0
      %p124 = por %p122, %p123
      %p125 = scmp.ne.s32.totalorder %s113, %s114
      %p126 = scmp.eq.s32.totalorder %s26, 15
      %p127 = por %p125, %p126
      %p129 = scmp.ne.s32.totalorder %s114, %s128
      %p130 = scmp.eq.s32.totalorder %s26, 0
      %p131 = por %p129, %p130
      %s133 = sadd.s32 %s132, 1
      %p136 = scmp.eq.s32.totalorder %s20, 15
      %p137 = scmp.ne.s32.totalorder %s132, %s134
      %p138 = scmp.eq.s32.totalorder %s20, 0
      %p139 = por %p137, %p138
      %p140 = scmp.ne.s32.totalorder %s132, %s134
      %p141 = scmp.eq.s32.totalorder %s25, 15
      %p142 = por %p140, %p141
      %p143 = scmp.ne.s32.totalorder %s134, %s135
      %p144 = scmp.eq.s32.totalorder %s25, 0
      %p145 = por %p143, %p144
      %p146 = scmp.ne.s32.totalorder %s134, %s135
      %p147 = scmp.eq.s32.totalorder %s26, 15
      %p148 = por %p146, %p147
      %p150 = scmp.ne.s32.totalorder %s135, %s149
      %p151 = scmp.eq.s32.totalorder %s26, 0
      %p152 = por %p150, %p151
      %s154 = sadd.s32 %s153, 1
      %p157 = scmp.eq.s32.totalorder %s20, 15
      %p158 = scmp.ne.s32.totalorder %s153, %s155
      %p159 = scmp.eq.s32.totalorder %s20, 0
      %p160 = por %p158, %p159
      %p161 = scmp.ne.s32.totalorder %s153, %s155
      %p162 = scmp.eq.s32.totalorder %s25, 15
      %p163 = por %p161, %p162
      %p164 = scmp.ne.s32.totalorder %s155, %s156
      %p165 = scmp.eq.s32.totalorder %s25, 0
      %p166 = por %p164, %p165
      %p167 = scmp.ne.s32.totalorder %s155, %s156
      %p168 = scmp.eq.s32.totalorder %s26, 15
      %p169 = por %p167, %p168
      %p171 = scmp.ne.s32.totalorder %s156, %s170
      %p172 = scmp.eq.s32.totalorder %s26, 0
      %p173 = por %p171, %p172
      %s175 = sadd.s32 %s174, 1
      %p178 = scmp.eq.s32.totalorder %s20, 15
      %p179 = scmp.ne.s32.totalorder %s174, %s176
      %p180 = scmp.eq.s32.totalorder %s20, 0
      %p181 = por %p179, %p180
      %p182 = scmp.ne.s32.totalorder %s174, %s176
      %p183 = scmp.eq.s32.totalorder %s25, 15
      %p184 = por %p182, %p183
      %p185 = scmp.ne.s32.totalorder %s176, %s177
      %p186 = scmp.eq.s32.totalorder %s25, 0
      %p187 = por %p185, %p186
      %p188 = scmp.ne.s32.totalorder %s176, %s177
      %p189 = scmp.eq.s32.totalorder %s26, 15
      %p190 = por %p188, %p189
      %p192 = scmp.ne.s32.totalorder %s177, %s191
      %p193 = scmp.eq.s32.totalorder %s26, 0
      %p194 = por %p192, %p193
      %s195 = smul.u32 %s28, 4
      %s196 = sadd.s32 %s195, %s29
      %s197 = smul.u32 %s42, 4
      %s198 = sadd.s32 %s197, %s38
      %s199 = ssub.s32 %s27, %s46
      %s200 = ssub.s32 %s196, %s198
      %s201 = sor.u32 %s199, %s200
      %p202 = scmp.eq.s32.totalorder %s201, 0
      %s204 = sadd.s32 %s203, 1
      %s205 = scalar_select %p202, %s203, %s204
      %p208 = pneg %p202
      %p209 = scmp.eq.s32.totalorder %s20, 15
      %p210 = por %p208, %p209
      %p211 = scmp.ne.s32.totalorder %s203, %s206
      %p212 = scmp.eq.s32.totalorder %s20, 0
      %p213 = por %p211, %p212
      %p214 = scmp.ne.s32.totalorder %s203, %s206
      %p215 = scmp.eq.s32.totalorder %s25, 15
      %p216 = por %p214, %p215
      %p217 = scmp.ne.s32.totalorder %s206, %s207
      %p218 = scmp.eq.s32.totalorder %s25, 0
      %p219 = por %p217, %p218
      %p220 = scmp.ne.s32.totalorder %s206, %s207
      %p221 = scmp.eq.s32.totalorder %s26, 15
      %p222 = por %p220, %p221
      %p224 = scmp.ne.s32.totalorder %s207, %s223
      %p225 = scmp.eq.s32.totalorder %s26, 0
      %p226 = por %p224, %p225
      %s227 = ssub.s32 %s27, %s46
      %s228 = ssub.s32 %s28, %s42
      %s229 = sor.u32 %s227, %s228
      %p230 = scmp.eq.s32.totalorder %s229, 0
      %s232 = sadd.s32 %s231, 1
      %s233 = scalar_select %p230, %s231, %s232
      %p236 = pneg %p230
      %p237 = scmp.eq.s32.totalorder %s20, 15
      %p238 = por %p236, %p237
      %p239 = scmp.ne.s32.totalorder %s231, %s234
      %p240 = scmp.eq.s32.totalorder %s20, 0
      %p241 = por %p239, %p240
      %p242 = scmp.ne.s32.totalorder %s231, %s234
      %p243 = scmp.eq.s32.totalorder %s25, 15
      %p244 = por %p242, %p243
      %p245 = scmp.ne.s32.totalorder %s234, %s235
      %p246 = scmp.eq.s32.totalorder %s25, 0
      %p247 = por %p245, %p246
      %p248 = scmp.ne.s32.totalorder %s234, %s235
      %p249 = scmp.eq.s32.totalorder %s26, 15
      %p250 = por %p248, %p249
      %p252 = scmp.ne.s32.totalorder %s235, %s251
      %p253 = scmp.eq.s32.totalorder %s26, 0
      %p254 = por %p252, %p253
      %p255 = scmp.le.s32.totalorder 1, %s20
      %p256 = scmp.lt.s32.totalorder %s20, 17
      %p257 = pnand %p255, %p256
      %p258 = pneg %p257
      // Predicated region
      $region9: #{tpu_custom_call.1} parent=5 // pred_check
        _
      $region10: #{tpu_custom_call.1} parent=5 // pred_check_branch
        %260 = sbr.rel (%p257) target = $region12
      $region11: #{tpu_custom_call.1} parent=5 // pred_region
        %s261 = ssub.s32 %s20, 1
        // Predicated region
        $region13: #{tpu_custom_call.1} parent=11 // pred_check
          %p262 = pneg %p124
        $region14: #{tpu_custom_call.1} parent=11 // pred_check_branch
          %264 = sbr.rel (%p262) target = $region16
        $region15: #{tpu_custom_call.1} parent=11 // pred_region
          _
        $region16: #{tpu_custom_call.1} parent=11 // pred_fallthru
          _
        // Predicated region
        $region17: #{tpu_custom_call.1} parent=11 // pred_check
          %p265 = pneg %p145
        $region18: #{tpu_custom_call.1} parent=11 // pred_check_branch
          %267 = sbr.rel (%p265) target = $region20
        $region19: #{tpu_custom_call.1} parent=11 // pred_region
          _
        $region20: #{tpu_custom_call.1} parent=11 // pred_fallthru
          _
        // Predicated region
        $region21: #{tpu_custom_call.1} parent=11 // pred_check
          %p268 = pneg %p166
        $region22: #{tpu_custom_call.1} parent=11 // pred_check_branch
          %270 = sbr.rel (%p268) target = $region24
        $region23: #{tpu_custom_call.1} parent=11 // pred_region
          _
        $region24: #{tpu_custom_call.1} parent=11 // pred_fallthru
          _
        // Predicated region
        $region25: #{tpu_custom_call.1} parent=11 // pred_check
          %p271 = pneg %p187
        $region26: #{tpu_custom_call.1} parent=11 // pred_check_branch
          %273 = sbr.rel (%p271) target = $region28
        $region27: #{tpu_custom_call.1} parent=11 // pred_region
          _
        $region28: #{tpu_custom_call.1} parent=11 // pred_fallthru
          _
      $region12: #{tpu_custom_call.1} parent=5 // pred_fallthru
        _
      %p274 = scmp.lt.s32.totalorder %s20, 16
      // Predicated region
      $region29: #{tpu_custom_call.1} parent=5 // pred_check
        %p275 = pneg %p274
      $region30: #{tpu_custom_call.1} parent=5 // pred_check_branch
        %277 = sbr.rel (%p275) target = $region32
      $region31: #{tpu_custom_call.1} parent=5 // pred_region
        // Predicated region
        $region33: #{tpu_custom_call.1} parent=31 // pred_check
          %p278 = pneg %p65
        $region34: #{tpu_custom_call.1} parent=31 // pred_check_branch
          %280 = sbr.rel (%p278) target = $region36
        $region35: #{tpu_custom_call.1} parent=31 // pred_region
          %s281 = smul.u32 %s28, 4
          %s282 = sadd.s32 %s281, %s29
          %s283 = smul.u32 2, %s282
          %p284 = scmp.lt.s32.totalorder %s27, 1
          %s285 = scalar_select %p284, %s27, 1
          %p286 = scmp.lt.s32.totalorder %s283, 15
          %s287 = scalar_select %p286, %s283, 15
          %s288 = smul.addr %s285, 16
          %s289 = sadd.s32 %s287, %s288
          %s290 = scalar_lea.vmem %s0, %s289
          %s291 = smul.u32 %s28, 4
          %s292 = sadd.s32 %s291, %s29
          %s293 = smul.u32 2, %s292
        $region36: #{tpu_custom_call.1} parent=31 // pred_fallthru
          _
        // Predicated region
        $region37: #{tpu_custom_call.1} parent=31 // pred_check
          %p294 = pneg %p97
        $region38: #{tpu_custom_call.1} parent=31 // pred_check_branch
          %296 = sbr.rel (%p294) target = $region40
        $region39: #{tpu_custom_call.1} parent=31 // pred_region
          %s297 = sand.u32 %s87, 1
          %s298 = scalar_lea.sflag [#allocation4], %s297
          %s299 = sand.u32 %s87, 1
          %s300 = smul.addr %s299, 4
          %s301 = scalar_lea.vmem [#allocation3], %s300
          %s302 = smul.u32 %s28, 4
          %s303 = sadd.s32 %s302, %s29
          %s304 = smul.u32 2, %s303
          %s306 = ssub.s32 64, 64
          %307 = vsyncadd %s298, %s306
          %s308 = smul.addr %s27, 16
          %s309 = sadd.s32 %s304, %s308
          %s310 = smul.addr %s309, 32
          %s311 = scalar_lea.hbm %s1, %s310
          %s313 = sshll.u32 %s301, 4
          %s314 = int_to_ptr.vmem [resolvable:$true] %s313
          %316 = dma.hbm_to_vmem [thread:$0]  %s311, 64, %s314, %s298
        $region40: #{tpu_custom_call.1} parent=31 // pred_fallthru
          _
      $region32: #{tpu_custom_call.1} parent=5 // pred_fallthru
        _
      %p317 = scmp.le.s32.totalorder 1, %s20
      %p318 = scmp.lt.s32.totalorder %s20, 17
      %p319 = pnand %p317, %p318
      %p320 = pneg %p319
      // Predicated region
      $region41: #{tpu_custom_call.1} parent=5 // pred_check
        _
      $region42: #{tpu_custom_call.1} parent=5 // pred_check_branch
        %322 = sbr.rel (%p319) target = $region44
      $region43: #{tpu_custom_call.1} parent=5 // pred_region
        %s323 = ssub.s32 %s20, 1
        %s324 = sand.u32 %s90, 1
        %s325 = scalar_lea.sflag [#allocation4], %s324
        %s326 = sand.u32 %s90, 1
        %s327 = smul.addr %s326, 4
        %s328 = scalar_lea.vmem [#allocation3], %s327
        // Predicated region
        $region45: #{tpu_custom_call.1} parent=43 // pred_check
          %p329 = pneg %p103
        $region46: #{tpu_custom_call.1} parent=43 // pred_check_branch
          %331 = sbr.rel (%p329) target = $region48
        $region47: #{tpu_custom_call.1} parent=43 // pred_region
          %332 = dma.done %s325, 64
        $region48: #{tpu_custom_call.1} parent=43 // pred_fallthru
          _
        %s333 = smul.u32 %s31, 4
        %s334 = sadd.s32 %s333, %s32
        %s335 = smul.u32 2, %s334
        %p336 = scmp.lt.s32.totalorder %s30, 1
        %s337 = scalar_select %p336, %s30, 1
        %p338 = scmp.lt.s32.totalorder %s335, 15
        %s339 = scalar_select %p338, %s335, 15
        %s340 = smul.addr %s337, 16
        %s341 = sadd.s32 %s339, %s340
        %s342 = scalar_lea.vmem %s0, %s341
        %p343 = pneg %p71
        %p344 = pneg %p68
        %s345 = sand.u32 %s90, 1
        %s346 = scalar_lea.sflag [#allocation4], %s345
        %s347 = sand.u32 %s90, 1
        %s348 = smul.addr %s347, 4
        %s349 = scalar_lea.vmem [#allocation3], %s348
        %p350 = pneg %p103
        %p351 = pneg %p100
        %p352 = pneg %p124
        %p353 = pneg %p121
        %p354 = pneg %p145
        %p355 = pneg %p142
        %p356 = pneg %p166
        %p357 = pneg %p163
        %p358 = pneg %p187
        %p359 = pneg %p184
        %p360 = pneg %p219
        %p361 = pneg %p216
        %s362 = sand.u32 %s206, 1
        %s363 = scalar_lea.sflag [#allocation5], %s362
        %s364 = sand.u32 %s206, 1
        %s365 = smul.addr %s364, 32
        %s366 = scalar_lea.vmem [#allocation6], %s365
        %p367 = pneg %p247
        %p368 = pneg %p244
        %p369 = scmp.lt.s32.totalorder %s30, 1
        %s370 = scalar_select %p369, %s30, 1
        %p371 = scmp.lt.s32.totalorder %s31, 1
        %s372 = scalar_select %p371, %s31, 1
        %s373 = smul.addr %s372, 2
        %s374 = smul.addr %s370, 4
        %s375 = sadd.s32 %s373, %s374
        %s376 = smul.addr %s375, 8
        %s377 = scalar_lea.vmem %s7, %s376
        %s378 = smul.u32 %s31, 4
        %s379 = sadd.s32 %s378, %s32
        %s380 = smul.u32 2, %s379
        %p381 = scmp.lt.s32.totalorder %s30, 1
        %s382 = scalar_select %p381, %s30, 1
        %p383 = scmp.lt.s32.totalorder %s380, 15
        %s384 = scalar_select %p383, %s380, 15
        %s385 = smul.addr %s382, 16
        %s386 = sadd.s32 %s384, %s385
        %s387 = scalar_lea.vmem %s0, %s386
        %s388 = smul.u32 %s31, 4
        %s389 = sadd.s32 %s388, %s32
        %s390 = smul.u32 2, %s389
        %s391 = smul.u32 %s31, 4
        %s392 = sadd.s32 %s391, %s32
        %s393 = smul.u32 2, %s392
        %s394 = smul.u32 %s31, 4
        %s395 = sadd.s32 %s394, %s32
        %s396 = smul.u32 2, %s395
        %p397 = scmp.lt.s32.totalorder %s30, 1
        %s398 = scalar_select %p397, %s30, 1
        %p399 = scmp.lt.s32.totalorder %s31, 1
        %s400 = scalar_select %p399, %s31, 1
        %s401 = smul.addr %s400, 2
        %s402 = smul.addr %s398, 4
        %s403 = sadd.s32 %s401, %s402
        %s404 = smul.addr %s403, 8
        %s405 = scalar_lea.vmem %s7, %s404
        %p406 = scmp.eq.s32.totalorder %s32, 0
        // Predicated region
        $region49: #{tpu_custom_call.1} parent=43 // pred_check
          %p407 = pneg %p406
        $region50: #{tpu_custom_call.1} parent=43 // pred_check_branch
          %409 = sbr.rel (%p407) target = $region52
        $region51: #{tpu_custom_call.1} parent=43 // pred_region
          %vm410 = vcmask 7168
          %411 = vst.msk [vmem:[#allocation2] sm:$0xff] %vm410, 0.0
          %412 = vst.msk [vmem:[#allocation2 + $0x8] sm:$0xff] %vm410, 0.0
        $region52: #{tpu_custom_call.1} parent=43 // pred_fallthru
          _
        %v413 = vld [vmem:[%s387] sm:$0x3]
        %v414 = vld [vmem:[%s328] sm:$0xf]
        %v415 = vld [vmem:[%s2] sm:$0xff]
        %v416 = vld [vmem:[%s2 + $0x8] sm:$0xff]
        %418 = vset.pattern.permute.xlu0 0
        %419 = vperm.xlu0 %418, %v415
        %v420 = vpop.permute.xlu0 %419
        %423 = vset.pattern.permute.xlu0 0
        %424 = vperm.xlu0 %423, %v416
        %v425 = vpop.permute.xlu0 %424
        %v428 = vlaneseq
        %v429 = vshrl.u32 %v428, 7
        %v430 = vsub.s32 0, %v429
        %v431 = vrot.slane %v413, %v430
        %v432 = vlaneseq
        %v433 = vshrl.u32 %v432, 7
        %v434 = vsub.s32 1, %v433
        %v435 = vrot.slane %v413, %v434
        %v438 = vmul.f32 %v420, %v431
        %v439 = vmul.f32 %v420, %v435
        %v440 = vmul.f32 %v425, %v431
        %v441 = vmul.f32 %v425, %v435
        %v442 = vld [vmem:[%s3] sm:$0xff]
        %v443 = vld [vmem:[%s3 + $0x8] sm:$0xff]
        %445 = vset.pattern.permute.xlu0 0
        %446 = vperm.xlu0 %445, %v442
        %v447 = vpop.permute.xlu0 %446
        %450 = vset.pattern.permute.xlu0 0
        %451 = vperm.xlu0 %450, %v443
        %v452 = vpop.permute.xlu0 %451
        %v454 = vadd.f32 %v438, %v447
        %v455 = vadd.f32 %v439, %v447
        %v456 = vadd.f32 %v440, %v452
        %v457 = vadd.f32 %v441, %v452
        %v458 = vmax.f32 %v454, 0.0
        %v459 = vmax.f32 %v455, 0.0
        %v460 = vmax.f32 %v456, 0.0
        %v461 = vmax.f32 %v457, 0.0
        %v462 = vld [vmem:[%s4] sm:$0xff]
        %v463 = vld [vmem:[%s4 + $0x8] sm:$0xff]
        %v464 = vld [vmem:[%s5] sm:$0xff]
        %v465 = vld [vmem:[%s5 + $0x8] sm:$0xff]
        %467 = vset.pattern.permute.xlu0 0
        %468 = vperm.xlu0 %467, %v464
        %v469 = vpop.permute.xlu0 %468
        %472 = vset.pattern.permute.xlu0 0
        %473 = vperm.xlu0 %472, %v465
        %v474 = vpop.permute.xlu0 %473
        %vm476 = vcmask 130048
        %v478 = vsel %vm476, %v462, 0
        %v481 = vsel %vm476, %v463, 0
        %483 = vmatprep.subr.mxu0 0.0
        %484 = vmatpush1.msra.mxu0 0.0
        %485 = vmatprep.subr.mxu0 0.0
        %486 = vmatpush1.msra.mxu0 0.0
        %487 = vmatprep.subr.mxu0 0.0
        %488 = vmatpush1.msra.mxu0 0.0
        %489 = vmatprep.subr.mxu0 0.0
        %490 = vmatpush1.msra.mxu0 0.0
        %491 = vmatprep.subr.mxu0 0.0
        %492 = vmatpush1.msra.mxu0 0.0
        %493 = vmatprep.subr.mxu0 0.0
        %494 = vmatpush1.msra.mxu0 0.0
        %495 = vmatprep.subr.mxu0 0.0
        %496 = vmatpush1.msra.mxu0 0.0
        %497 = vmatprep.subr.mxu0 0.0
        %498 = vmatpush1.msra.mxu0 0.0
        %499 = vmatprep.subr.mxu0 0.0
        %500 = vmatpush1.msra.mxu0 0.0
        %501 = vmatprep.subr.mxu0 0.0
        %502 = vmatpush1.msra.mxu0 0.0
        %503 = vmatprep.subr.mxu0 0.0
        %504 = vmatpush1.msra.mxu0 0.0
        %505 = vmatprep.subr.mxu0 0.0
        %506 = vmatpush1.msra.mxu0 0.0
        %507 = vmatprep.subr.mxu0 0.0
        %508 = vmatpush1.msra.mxu0 0.0
        %509 = vmatprep.subr.mxu0 0.0
        %510 = vmatpush1.msra.mxu0 0.0
        %511 = vmatprep.subr.mxu0 %v461
        %512 = vmatpush1.msra.mxu0 %v460
        %513 = vmatprep.subr.mxu0 %v459
        %514 = vmatpush1.msra.mxu0 %v458
        %515 = vmatprep.subr.mxu0 0.0
        %516 = vmatpush2.msra.mxu0 0.0
        %517 = vmatprep.subr.mxu0 0.0
        %518 = vmatpush2.msra.mxu0 0.0
        %519 = vmatprep.subr.mxu0 0.0
        %520 = vmatpush2.msra.mxu0 0.0
        %521 = vmatprep.subr.mxu0 0.0
        %522 = vmatpush2.msra.mxu0 0.0
        %523 = vmatprep.subr.mxu0 0.0
        %524 = vmatpush2.msra.mxu0 0.0
        %525 = vmatprep.subr.mxu0 0.0
        %526 = vmatpush2.msra.mxu0 0.0
        %527 = vmatprep.subr.mxu0 0.0
        %528 = vmatpush2.msra.mxu0 0.0
        %529 = vmatprep.subr.mxu0 0.0
        %530 = vmatpush2.msra.mxu0 0.0
        %531 = vmatprep.subr.mxu0 0.0
        %532 = vmatpush2.msra.mxu0 0.0
        %533 = vmatprep.subr.mxu0 0.0
        %534 = vmatpush2.msra.mxu0 0.0
        %535 = vmatprep.subr.mxu0 0.0
        %536 = vmatpush2.msra.mxu0 0.0
        %537 = vmatprep.subr.mxu0 0.0
        %538 = vmatpush2.msra.mxu0 0.0
        %539 = vmatprep.subr.mxu0 0.0
        %540 = vmatpush2.msra.mxu0 0.0
        %541 = vmatprep.subr.mxu0 0.0
        %542 = vmatpush2.msra.mxu0 0.0
        %543 = vmatprep.subr.mxu0 0.0
        %544 = vmatpush2.msra.mxu0 0.0
        %545 = vmatprep.subr.mxu0 0.0
        %546 = vmatpush2.msra.mxu0 0.0
        %547 = vmatprep.mubr.f32.mxu0 0.0
        %548 = vmatmul.mubr.f32.gmra.mxu0 %v478
        %v549 = vpop.f32.mrf.mxu0
        %v550 = vadd.f32 %v469, %v549
        %v551 = vpop.f32.mrf.mxu0
        %v552 = vadd.f32 %v469, %v551
        %553 = vmatprep.mubr.f32.mxu0 0.0
        %554 = vmatmul.mubr.f32.gmra.mxu0 %v481
        %v555 = vpop.f32.mrf.mxu0
        %v556 = vadd.f32 %v474, %v555
        %v557 = vpop.f32.mrf.mxu0
        %v558 = vadd.f32 %v474, %v557
        %559 = vdwg.mxu0
        %vm560 = vcmp.eq.s32.totalorder %v414, 0
        %v561 = vsel %vm560, 1, 0
        %v562 = vlaneseq
        %v563 = vshrl.u32 %v562, 7
        %v564 = vsub.s32 0, %v563
        %v565 = vrot.slane %v561, %v564
        %v566 = vlaneseq
        %v567 = vshrl.u32 %v566, 7
        %v568 = vsub.s32 2, %v567
        %v569 = vrot.slane %v561, %v568
        %v570 = vlaneseq
        %v571 = vshrl.u32 %v570, 7
        %v572 = vsub.s32 0, %v571
        %v573 = vrot.slane %v565, %v572
        %v574 = vlaneseq
        %v575 = vshrl.u32 %v574, 7
        %v576 = vsub.s32 0, %v575
        %v577 = vrot.slane %v569, %v576
        %vm578 = vcmp.eq.s32.totalorder %v573, 1
        %vm579 = vcmp.eq.s32.totalorder %v577, 1
        %v580 = vsel %vm578, %v550, 0.0
        %v581 = vsel %vm579, %v552, 0.0
        %v582 = vlaneseq
        %v583 = vshrl.u32 %v582, 7
        %v584 = vsub.s32 1, %v583
        %v585 = vrot.slane %v561, %v584
        %v586 = vlaneseq
        %v587 = vshrl.u32 %v586, 7
        %v588 = vsub.s32 3, %v587
        %v589 = vrot.slane %v561, %v588
        %v590 = vlaneseq
        %v591 = vshrl.u32 %v590, 7
        %v592 = vsub.s32 1, %v591
        %v593 = vrot.slane %v585, %v592
        %v594 = vlaneseq
        %v595 = vshrl.u32 %v594, 7
        %v596 = vsub.s32 1, %v595
        %v597 = vrot.slane %v589, %v596
        %vm598 = vcmp.eq.s32.totalorder %v593, 1
        %vm599 = vcmp.eq.s32.totalorder %v597, 1
        %v600 = vsel %vm598, %v556, 0.0
        %v601 = vsel %vm599, %v558, 0.0
        %v602 = vadd.f32 %v580, %v600
        %v603 = vadd.f32 %v581, %v601
        %vm604 = vcmp.eq.s32.totalorder %v414, 1
        %v605 = vsel %vm604, 1, 0
        %v606 = vlaneseq
        %v607 = vshrl.u32 %v606, 7
        %v608 = vsub.s32 0, %v607
        %v609 = vrot.slane %v605, %v608
        %v610 = vlaneseq
        %v611 = vshrl.u32 %v610, 7
        %v612 = vsub.s32 2, %v611
        %v613 = vrot.slane %v605, %v612
        %v614 = vlaneseq
        %v615 = vshrl.u32 %v614, 7
        %v616 = vsub.s32 0, %v615
        %v617 = vrot.slane %v609, %v616
        %v618 = vlaneseq
        %v619 = vshrl.u32 %v618, 7
        %v620 = vsub.s32 0, %v619
        %v621 = vrot.slane %v613, %v620
        %vm622 = vcmp.eq.s32.totalorder %v617, 1
        %vm623 = vcmp.eq.s32.totalorder %v621, 1
        %v624 = vsel %vm622, %v550, 0.0
        %v625 = vsel %vm623, %v552, 0.0
        %v626 = vlaneseq
        %v627 = vshrl.u32 %v626, 7
        %v628 = vsub.s32 1, %v627
        %v629 = vrot.slane %v605, %v628
        %v630 = vlaneseq
        %v631 = vshrl.u32 %v630, 7
        %v632 = vsub.s32 3, %v631
        %v633 = vrot.slane %v605, %v632
        %v634 = vlaneseq
        %v635 = vshrl.u32 %v634, 7
        %v636 = vsub.s32 1, %v635
        %v637 = vrot.slane %v629, %v636
        %v638 = vlaneseq
        %v639 = vshrl.u32 %v638, 7
        %v640 = vsub.s32 1, %v639
        %v641 = vrot.slane %v633, %v640
        %vm642 = vcmp.eq.s32.totalorder %v637, 1
        %vm643 = vcmp.eq.s32.totalorder %v641, 1
        %v644 = vsel %vm642, %v556, 0.0
        %v645 = vsel %vm643, %v558, 0.0
        %v646 = vadd.f32 %v624, %v644
        %v647 = vadd.f32 %v625, %v645
        %648 = vst [vmem:[%s366] sm:$0xff] %v602
        %649 = vst [vmem:[%s366 + $0x8] sm:$0xff] %v603
        %650 = vst [vmem:[%s366 + $0x10] sm:$0xff] %v646
        %651 = vst [vmem:[%s366 + $0x18] sm:$0xff] %v647
        %v652 = vld [vmem:[#allocation2] sm:$0xff]
        %v653 = vld [vmem:[#allocation2 + $0x8] sm:$0xff]
        %v654 = vadd.f32 %v602, %v603
        %655 = vadd.xlane.f32.xlu0 %v654
        %v656 = vpop.xlane.xlu0 %655
        %v657 = vadd.f32 %v646, %v647
        %658 = vadd.xlane.f32.xlu0 %v657
        %v659 = vpop.xlane.xlu0 %658
        %v660 = vadd.f32 %v652, %v656
        %v661 = vadd.f32 %v653, %v659
        %vm662 = vcmask 7168
        %663 = vst.msk [vmem:[#allocation2] sm:$0xff] %vm662, %v660
        %664 = vst.msk [vmem:[#allocation2 + $0x8] sm:$0xff] %vm662, %v661
        %p665 = scmp.eq.s32.totalorder %s32, 3
        // Predicated region
        $region53: #{tpu_custom_call.1} parent=43 // pred_check
          %p666 = pneg %p665
        $region54: #{tpu_custom_call.1} parent=43 // pred_check_branch
          %668 = sbr.rel (%p666) target = $region56
        $region55: #{tpu_custom_call.1} parent=43 // pred_region
          %v669 = vld [vmem:[#allocation2] sm:$0xff]
          %v670 = vld [vmem:[#allocation2 + $0x8] sm:$0xff]
          %671 = vst.msk [vmem:[%s405] sm:$0xff] %vm662, %v669
          %672 = vst.msk [vmem:[%s405 + $0x8] sm:$0xff] %vm662, %v670
        $region56: #{tpu_custom_call.1} parent=43 // pred_fallthru
          _
        %s673 = sand.u32 %s206, 1
        %s674 = scalar_lea.sflag [#allocation5], %s673
        %s675 = sand.u32 %s206, 1
        %s676 = smul.addr %s675, 32
        %s677 = scalar_lea.vmem [#allocation6], %s676
        %p678 = scmp.lt.s32.totalorder %s30, 1
        %s679 = scalar_select %p678, %s30, 1
        %p680 = scmp.lt.s32.totalorder %s31, 1
        %s681 = scalar_select %p680, %s31, 1
        %s682 = smul.addr %s681, 2
        %s683 = smul.addr %s679, 4
        %s684 = sadd.s32 %s682, %s683
        %s685 = smul.addr %s684, 8
        %s686 = scalar_lea.vmem %s7, %s685
        // Predicated region
        $region57: #{tpu_custom_call.1} parent=43 // pred_check
          %p687 = pneg %p216
        $region58: #{tpu_custom_call.1} parent=43 // pred_check_branch
          %689 = sbr.rel (%p687) target = $region60
        $region59: #{tpu_custom_call.1} parent=43 // pred_region
          %s690 = smul.u32 %s31, 4
          %s691 = sadd.s32 %s690, %s32
          %s692 = smul.u32 2, %s691
          %s694 = ssub.s32 512, 512
          %695 = vsyncadd %s674, %s694
          %s696 = smul.addr %s30, 32
          %s697 = sadd.s32 %s692, %s696
          %s698 = smul.addr %s697, 128
          %s699 = scalar_lea.hbm %s6, %s698
          %s700 = sshll.u32 %s677, 4
          %s701 = int_to_ptr.vmem [resolvable:$true] %s700
          %706 = dma.vmem_to_hbm [thread:$0]  %s701, 512, %s699, %s674, 256, 2048, 16
        $region60: #{tpu_custom_call.1} parent=43 // pred_fallthru
          _
        // Predicated region
        $region61: #{tpu_custom_call.1} parent=43 // pred_check
          %p707 = pneg %p244
        $region62: #{tpu_custom_call.1} parent=43 // pred_check_branch
          %709 = sbr.rel (%p707) target = $region64
        $region63: #{tpu_custom_call.1} parent=43 // pred_region
          _
        $region64: #{tpu_custom_call.1} parent=43 // pred_fallthru
          _
      $region44: #{tpu_custom_call.1} parent=5 // pred_fallthru
        _
      %p710 = scmp.le.s32.totalorder 2, %s20
      // Predicated region
      $region65: #{tpu_custom_call.1} parent=5 // pred_check
        %p711 = pneg %p710
      $region66: #{tpu_custom_call.1} parent=5 // pred_check_branch
        %713 = sbr.rel (%p711) target = $region68
      $region67: #{tpu_custom_call.1} parent=5 // pred_region
        %s714 = ssub.s32 %s20, 2
        // Predicated region
        $region69: #{tpu_custom_call.1} parent=67 // pred_check
          %p715 = pneg %p222
        $region70: #{tpu_custom_call.1} parent=67 // pred_check_branch
          %717 = sbr.rel (%p715) target = $region72
        $region71: #{tpu_custom_call.1} parent=67 // pred_region
          %s718 = sand.u32 %s207, 1
          %s719 = scalar_lea.sflag [#allocation5], %s718
          %s720 = sand.u32 %s207, 1
          %s721 = smul.addr %s720, 32
          %s722 = scalar_lea.vmem [#allocation6], %s721
          %723 = dma.done %s719, 512
        $region72: #{tpu_custom_call.1} parent=67 // pred_fallthru
          _
        // Predicated region
        $region73: #{tpu_custom_call.1} parent=67 // pred_check
          %p724 = pneg %p250
        $region74: #{tpu_custom_call.1} parent=67 // pred_check_branch
          %726 = sbr.rel (%p724) target = $region76
        $region75: #{tpu_custom_call.1} parent=67 // pred_region
          %p727 = scmp.lt.s32.totalorder %s33, 1
          %s728 = scalar_select %p727, %s33, 1
          %p729 = scmp.lt.s32.totalorder %s34, 1
          %s730 = scalar_select %p729, %s34, 1
          %s731 = smul.addr %s730, 2
          %s732 = smul.addr %s728, 4
          %s733 = sadd.s32 %s731, %s732
          %s734 = smul.addr %s733, 8
          %s735 = scalar_lea.vmem %s7, %s734
        $region76: #{tpu_custom_call.1} parent=67 // pred_fallthru
          _
      $region68: #{tpu_custom_call.1} parent=5 // pred_fallthru
        _
    $region6: #{tpu_custom_call.1} parent=1 // loop_footer
      %s24 = sadd.s32 1, %s20
    $region7: #{tpu_custom_call.1} parent=1 // loop_footer_branch
      %19 = sbr.rel target = $region3
    $region8: #{tpu_custom_call.1} parent=1 // loop_exit
      _
    %736 = vsyncpa [#allocation4], 1
    %s737 = scalar_lea.sflag [#allocation4], 1
    %738 = vsyncpa %s737, 1
    %739 = vsyncpa [#allocation5], 1
    %s740 = scalar_lea.sflag [#allocation5], 1
    %741 = vsyncpa %s740, 1

</llo_original>
